<compile_context>
chip_gen: v6e
topology: v6e:2x2x1
jax: 0.10.0
libtpu: 0.0.40
codegen_flags: <defaults>
</compile_context>

<pallas_src>
import functools
import math

import jax
import jax.numpy as jnp
from jax.experimental import pallas as pl
from jax.experimental.pallas import tpu as pltpu

PREDICT_RESIDUAL = True  # mirrors C.pretrain.predict_residual


def _round_up(x, m):
    return (x + m - 1) // m * m


# ---------------------------------------------------------------------------
# Fused kernel: relu(x @ W1 + b1) (kept as a live bf16 value), then one
# lane-dense matmul against the concatenated [num | cat_0 | cat_1 | ...]
# weight, + bias, + narrow residual on the first F_pad lanes only.
# ---------------------------------------------------------------------------
def _head_kernel(*refs, f_pad, has_resid):
    if has_resid:
        x_ref, w1_ref, b1_ref, w2_ref, b2_ref, r_ref, o_ref = refs
    else:
        x_ref, w1_ref, b1_ref, w2_ref, b2_ref, o_ref = refs

    # Layer 1: bf16 MXU operands, f32 accumulate.
    h = jnp.dot(x_ref[...], w1_ref[...], preferred_element_type=jnp.float32)
    h = jnp.maximum(h + b1_ref[...], 0.0).astype(jnp.bfloat16)

    # Layer 2: all heads fused into one 128-padded, lane-dense output block.
    out = jnp.dot(h, w2_ref[...], preferred_element_type=jnp.float32) + b2_ref[...]

    if has_resid:
        n_pad = out.shape[-1]
        if f_pad == n_pad:
            o_ref[...] = out + r_ref[...]
        else:
            # Static, 128-lane-aligned split: residual touches only the num lanes.
            o_ref[:, :f_pad] = out[:, :f_pad] + r_ref[...]
            o_ref[:, f_pad:] = out[:, f_pad:]
    else:
        o_ref[...] = out


# ---------------------------------------------------------------------------
# Parameters (PyTorch-style uniform(-1/sqrt(fan_in), +1/sqrt(fan_in)))
# ---------------------------------------------------------------------------
def init_head_params(key, d_in, d_hidden, n_num_features, category_sizes):
    def uni(k, shape, fan_in):
        bound = 1.0 / math.sqrt(fan_in)
        return jax.random.uniform(k, shape, jnp.float32, -bound, bound)

    params = {}
    key, k1, k2 = jax.random.split(key, 3)
    # first: nn.Linear(d_in, d_hidden), stored as (d_in, d_hidden)
    params["first_w"] = uni(k1, (d_in, d_hidden), d_in)
    params["first_b"] = uni(k2, (1, d_hidden), d_in)

    # num_out: lib.NLinear(F, d_hidden, 1) collapsed to Wn (d_hidden, F), bn (1, F)
    key, k1, k2 = jax.random.split(key, 3)
    params["num_w"] = uni(k1, (d_hidden, n_num_features), d_hidden)
    params["num_b"] = uni(k2, (1, n_num_features), d_hidden)

    # cat_out: ModuleList([nn.Linear(d_hidden, o) for o in category_sizes])
    params["cat"] = []
    for o in category_sizes or []:
        key, k1, k2 = jax.random.split(key, 3)
        params["cat"].append(
            (uni(k1, (d_hidden, o), d_hidden), uni(k2, (1, o), d_hidden))
        )
    params["n_num_features"] = n_num_features
    params["category_sizes"] = list(category_sizes or [])
    return params


def pack_head_params(raw):
    """Zero-pad d_in -> mult of 16, d_hidden -> mult of 128, concatenate all
    second-stage heads along the output dim, pad to a multiple of 128 lanes,
    and cast matmul weights to bf16 (f32 accumulate). All padding is exact."""
    F = raw["n_num_features"]
    cat_sizes = raw["category_sizes"]
    d_in, d_hidden = raw["first_w"].shape

    d_in_pad = _round_up(d_in, 16)        # bf16 sublane packing for W1 rows
    d_hid_pad = _round_up(d_hidden, 128)  # lane-dense hidden dim

    w1 = raw["first_w"]
    b1 = raw["first_b"]
    if (d_in_pad, d_hid_pad) != (d_in, d_hidden):
        w1 = jnp.pad(w1, ((0, d_in_pad - d_in), (0, d_hid_pad - d_hidden)))
        b1 = jnp.pad(b1, ((0, 0), (0, d_hid_pad - d_hidden)))

    w_cols = [raw["num_w"]] + [w for (w, _) in raw["cat"]]
    b_cols = [raw["num_b"]] + [b for (_, b) in raw["cat"]]
    w2 = jnp.concatenate(w_cols, axis=1)            # (d_hidden, F_total)
    b2 = jnp.concatenate(b_cols, axis=1)            # (1, F_total)
    f_total = w2.shape[1]
    n_pad = _round_up(max(f_total, 1), 128)         # lane-dense fused output
    f_pad = _round_up(max(F, 1), 128)               # lane-dense residual width
    w2 = jnp.pad(w2, ((0, d_hid_pad - d_hidden), (0, n_pad - f_total)))
    b2 = jnp.pad(b2, ((0, 0), (0, n_pad - f_total)))

    cat_offsets = []
    start = F
    for o in cat_sizes:
        cat_offsets.append((start, o))
        start += o

    return {
        "w1": w1.astype(jnp.bfloat16),   # (d_in_pad, d_hid_pad)  bf16
        "b1": b1,                        # (1, d_hid_pad)         f32
        "w2": w2.astype(jnp.bfloat16),   # (d_hid_pad, n_pad)     bf16
        "b2": b2,                        # (1, n_pad)             f32
        "d_in": d_in,
        "n_num_features": F,
        "cat_offsets": cat_offsets,
        "n_pad": n_pad,
        "f_pad": f_pad,
    }


# ---------------------------------------------------------------------------
# Tile / VMEM heuristics
# ---------------------------------------------------------------------------
def _choose_b_tile(B, b_tile_max):
    """Multiple of 16; prefer >=2 grid steps (megacore on v7x), then minimal
    padding waste, then larger tiles (less per-step overhead)."""
    b16 = _round_up(max(B, 1), 16)
    cap = max(16, min(_round_up(b_tile_max, 16), b16))
    best_key, best_t = None, 16
    for t in range(16, cap + 1, 16):
        b_pad = _round_up(B, t)
        waste = b_pad - B
        n_iter = b_pad // t
        key = (0 if n_iter >= 2 else 1, waste, -t)
        if best_key is None or key < best_key:
            best_key, best_t = key, t
    return best_t


def _vmem_limit_bytes(b_tile, d_in_pad, d_hid_pad, n_pad, f_pad, use_resid):
    streamed = (
        2 * b_tile * d_in_pad * 2              # x bf16 (double-buffered)
        + 2 * b_tile * n_pad * 4               # output f32 (double-buffered)
        + (2 * b_tile * f_pad * 4 if use_resid else 0)  # residual f32
    )
    resident = (
        d_in_pad * d_hid_pad * 2               # W1 bf16
        + d_hid_pad * n_pad * 2                # W2 bf16
        + (d_hid_pad + n_pad) * 4              # biases f32
    )
    internal = b_tile * d_hid_pad * 6          # live h (f32 + bf16) spill headroom
    need = streamed + 2 * resident + internal  # 2x resident: covers buffered fallback
    try:
        phys = int(pltpu.get_tpu_info().vmem_capacity_bytes)
    except Exception:
        phys = 64 * 1024 * 1024                # conservative (v7x per-TC)
    cap = int(phys * 0.6)                      # ~38 MiB on v7x, ~77 MiB on v5e/v6e
    return int(min(max(2 * need, 8 * 1024 * 1024), cap))


# ---------------------------------------------------------------------------
# Forward (mirrors Head.forward for 2-D input h)
# ---------------------------------------------------------------------------
def head_forward(packed, h, x_num_init=None, *, b_tile_max=512):
    w1, b1, w2, b2 = packed["w1"], packed["b1"], packed["w2"], packed["b2"]
    d_in_pad, d_hid_pad = w1.shape
    n_pad = packed["n_pad"]
    f_pad = packed["f_pad"]
    F = packed["n_num_features"]
    d_in = packed["d_in"]

    B = h.shape[0]
    b_tile = _choose_b_tile(B, b_tile_max)
    b_pad = _round_up(B, b_tile)

    # Activations stream as bf16 (halves x HBM traffic; MXU consumes bf16 anyway).
    x = h.astype(jnp.bfloat16)
    if (b_pad, d_in_pad) != (B, d_in):
        x = jnp.pad(x, ((0, b_pad - B), (0, d_in_pad - d_in)))

    use_resid = PREDICT_RESIDUAL and (x_num_init is not None)
    resid = None
    if use_resid:
        resid = jnp.pad(
            x_num_init.astype(jnp.float32),
            ((0, b_pad - B), (0, f_pad - F)),
        )

    vmem_limit = _vmem_limit_bytes(b_tile, d_in_pad, d_hid_pad, n_pad, f_pad, use_resid)
    cost = pl.CostEstimate(
        flops=2 * b_pad * (d_in_pad * d_hid_pad + d_hid_pad * n_pad),
        transcendentals=0,
        bytes_accessed=int(
            x.size * 2
            + (resid.size * 4 if use_resid else 0)
            + b_pad * n_pad * 4
            + w1.size * 2 + w2.size * 2 + b1.size * 4 + b2.size * 4
        ),
    )

    kern = functools.partial(_head_kernel, f_pad=f_pad, has_resid=use_resid)
    grid = (b_pad // b_tile,)

    def run(single_buffer_weights):
        def wspec(shape):
            kw = {}
            if single_buffer_weights and hasattr(pl, "Buffered"):
                # Grid-invariant operands: double-buffering them is pure VMEM waste.
                kw["pipeline_mode"] = pl.Buffered(1)
            return pl.BlockSpec(shape, lambda *_: (0,) * len(shape), **kw)

        in_specs = [
            pl.BlockSpec((b_tile, d_in_pad), lambda i: (i, 0)),   # x (batch-tiled, bf16)
            wspec((d_in_pad, d_hid_pad)),                         # W1 (resident)
            wspec((1, d_hid_pad)),                                # b1
            wspec((d_hid_pad, n_pad)),                            # W2 (resident)
            wspec((1, n_pad)),                                    # b2
        ]
        args = (x, w1, b1, w2, b2)
        if use_resid:
            in_specs.append(pl.BlockSpec((b_tile, f_pad), lambda i: (i, 0)))
            args = args + (resid,)

        call = pl.pallas_call(
            kern,
            out_shape=jax.ShapeDtypeStruct((b_pad, n_pad), jnp.float32),
            grid_spec=pltpu.PrefetchScalarGridSpec(
                num_scalar_prefetch=0,
                grid=grid,
                in_specs=in_specs,
                out_specs=pl.BlockSpec((b_tile, n_pad), lambda i: (i, 0)),
            ),
            compiler_params=pltpu.CompilerParams(
                dimension_semantics=("parallel",),
                vmem_limit_bytes=vmem_limit,
            ),
            cost_estimate=cost,
        )
        return call(*args)

    try:
        out = jax.block_until_ready(run(True))
    except Exception:
        # Fallback: default (double) buffering for the weight operands.
        out = run(False)

    num_out = out[:B, :F]
    cat_out = [out[:B, s:s + o] for (s, o) in packed["cat_offsets"]] or None
    # TODO(synk): torch .squeeze() collapses the batch dim when B == 1 and the
    # NLinear 3-D-input path (h.ndim == 3 with distinct per-feature rows) are
    # not replicated; the 2-D path implemented here is exact.
    return num_out, cat_out


# ---------------------------------------------------------------------------
if __name__ == "__main__":
    B, d_in, d_hidden, n_num_features = 8, 32, 64, 8
    category_sizes = [3, 5]

    key = jax.random.PRNGKey(0)
    kp, kh, kx = jax.random.split(key, 3)

    raw = init_head_params(kp, d_in, d_hidden, n_num_features, category_sizes)
    packed = pack_head_params(raw)

    h = jax.random.normal(kh, (B, d_in), jnp.float32)
    x_num_init = jax.random.normal(kx, (B, n_num_features), jnp.float32)

    num_out, cat_out = head_forward(packed, h, x_num_init)
    num_out = jax.block_until_ready(num_out)
    cat_out = [jax.block_until_ready(c) for c in cat_out]

    # Plain-JAX reference with identical numerics (bf16 MXU operands, f32 accumulate,
    # zero-padded dims contribute exactly zero).
    d_in_pad = packed["w1"].shape[0]
    x_ref_in = jnp.pad(h.astype(jnp.bfloat16), ((0, 0), (0, d_in_pad - d_in)))
    h_ref = jnp.maximum(
        jnp.dot(x_ref_in, packed["w1"], preferred_element_type=jnp.float32)
        + packed["b1"], 0.0).astype(jnp.bfloat16)
    full_ref = jnp.dot(h_ref, packed["w2"],
                       preferred_element_type=jnp.float32) + packed["b2"]
    num_ref = full_ref[:, :n_num_features] + x_num_init
    cat_ref = [full_ref[:, s:s + o] for (s, o) in packed["cat_offsets"]]

    assert num_out.shape == (B, n_num_features)
    assert jnp.allclose(num_out, num_ref, atol=2e-2, rtol=2e-2)
    assert all(
        c.shape == (B, o) and jnp.allclose(c, cr, atol=2e-2, rtol=2e-2)
        for c, cr, o in zip(cat_out, cat_ref, category_sizes)
    )

    print("KERNEL_OK")
</pallas_src>

<mosaic_0001>
module attributes {stable_mosaic.version = 11 : i64} {
  func.func @_head_kernel(%arg0: i32, %arg1: memref<16x32xbf16, #tpu.memory_space<vmem>>, %arg2: memref<32x128xbf16, #tpu.memory_space<vmem>>, %arg3: memref<1x128xf32, #tpu.memory_space<vmem>>, %arg4: memref<128x128xbf16, #tpu.memory_space<vmem>>, %arg5: memref<1x128xf32, #tpu.memory_space<vmem>>, %arg6: memref<16x128xf32, #tpu.memory_space<vmem>>, %arg7: memref<16x128xf32, #tpu.memory_space<vmem>>) attributes {dimension_semantics = [#tpu.dimension_semantics<parallel>], iteration_bounds = array<i64: 1>, scalar_prefetch = 0 : i64, scratch_operands = 0 : i64, tpu.core_type = #tpu.core_type<tc>, window_params = [{transform_indices = @transform_0, window_bounds = array<i64: 16, 32>}, {pipeline_mode = #tpu.pipeline_mode<synchronous>, transform_indices = @transform_1, window_bounds = array<i64: 32, 128>}, {pipeline_mode = #tpu.pipeline_mode<synchronous>, transform_indices = @transform_2, window_bounds = array<i64: 1, 128>}, {pipeline_mode = #tpu.pipeline_mode<synchronous>, transform_indices = @transform_3, window_bounds = array<i64: 128, 128>}, {pipeline_mode = #tpu.pipeline_mode<synchronous>, transform_indices = @transform_4, window_bounds = array<i64: 1, 128>}, {transform_indices = @transform_5, window_bounds = array<i64: 16, 128>}, {transform_indices = @transform_6, window_bounds = array<i64: 16, 128>}]} {
    %c0 = arith.constant 0 : index
    %c0_0 = arith.constant 0 : index
    %0 = vector.load %arg1[%c0, %c0_0] : memref<16x32xbf16, #tpu.memory_space<vmem>>, vector<16x32xbf16>
    %c0_1 = arith.constant 0 : index
    %c0_2 = arith.constant 0 : index
    %1 = vector.load %arg2[%c0_1, %c0_2] : memref<32x128xbf16, #tpu.memory_space<vmem>>, vector<32x128xbf16>
    %cst = arith.constant dense<0.000000e+00> : vector<16x128xf32>
    %2 = tpu.matmul %0, %1, %cst {dimension_numbers = #tpu.dot_dimension_numbers<[1], [0], [0], [1], [0, 0, 1, 1], [], []>} : vector<16x32xbf16>, vector<32x128xbf16>, vector<16x128xf32> -> vector<16x128xf32>
    %c0_3 = arith.constant 0 : index
    %c0_4 = arith.constant 0 : index
    %3 = vector.load %arg3[%c0_3, %c0_4] : memref<1x128xf32, #tpu.memory_space<vmem>>, vector<1x128xf32>
    %4 = vector.broadcast %3 : vector<1x128xf32> to vector<16x128xf32>
    %5 = arith.addf %2, %4 : vector<16x128xf32>
    %cst_5 = arith.constant 0.000000e+00 : f32
    %6 = vector.broadcast %cst_5 : f32 to vector<16x128xf32>
    %7 = arith.maximumf %5, %6 : vector<16x128xf32>
    %8 = arith.truncf %7 : vector<16x128xf32> to vector<16x128xbf16>
    %c0_6 = arith.constant 0 : index
    %c0_7 = arith.constant 0 : index
    %9 = vector.load %arg4[%c0_6, %c0_7] : memref<128x128xbf16, #tpu.memory_space<vmem>>, vector<128x128xbf16>
    %cst_8 = arith.constant dense<0.000000e+00> : vector<16x128xf32>
    %10 = tpu.matmul %8, %9, %cst_8 {dimension_numbers = #tpu.dot_dimension_numbers<[1], [0], [0], [1], [0, 0, 1, 1], [], []>} : vector<16x128xbf16>, vector<128x128xbf16>, vector<16x128xf32> -> vector<16x128xf32>
    %c0_9 = arith.constant 0 : index
    %c0_10 = arith.constant 0 : index
    %11 = vector.load %arg5[%c0_9, %c0_10] : memref<1x128xf32, #tpu.memory_space<vmem>>, vector<1x128xf32>
    %12 = vector.broadcast %11 : vector<1x128xf32> to vector<16x128xf32>
    %13 = arith.addf %10, %12 : vector<16x128xf32>
    %c0_11 = arith.constant 0 : index
    %c0_12 = arith.constant 0 : index
    %14 = vector.load %arg6[%c0_11, %c0_12] : memref<16x128xf32, #tpu.memory_space<vmem>>, vector<16x128xf32>
    %15 = arith.addf %13, %14 : vector<16x128xf32>
    %c0_13 = arith.constant 0 : index
    %c0_14 = arith.constant 0 : index
    %16 = vector.load %arg7[%c0_13, %c0_14] : memref<16x128xf32, #tpu.memory_space<vmem>>, vector<16x128xf32>
    tpu.vector_store %arg7[%c0_13, %c0_14], %15 {strides = array<i32>} : memref<16x128xf32, #tpu.memory_space<vmem>>, vector<16x128xf32>,
    return
  }
  func.func @transform_0(%arg0: i32) -> (i32, i32) {
    %c0_i32 = arith.constant 0 : i32
    %c0_i32_0 = arith.constant 0 : i32
    return %arg0, %c0_i32 : i32, i32
  }
  func.func @transform_1(%arg0: i32) -> (i32, i32) {
    %c0_i32 = arith.constant 0 : i32
    %c0_i32_0 = arith.constant 0 : i32
    %c0_i32_1 = arith.constant 0 : i32
    return %c0_i32, %c0_i32_0 : i32, i32
  }
  func.func @transform_2(%arg0: i32) -> (i32, i32) {
    %c0_i32 = arith.constant 0 : i32
    %c0_i32_0 = arith.constant 0 : i32
    %c0_i32_1 = arith.constant 0 : i32
    return %c0_i32, %c0_i32_0 : i32, i32
  }
  func.func @transform_3(%arg0: i32) -> (i32, i32) {
    %c0_i32 = arith.constant 0 : i32
    %c0_i32_0 = arith.constant 0 : i32
    %c0_i32_1 = arith.constant 0 : i32
    return %c0_i32, %c0_i32_0 : i32, i32
  }
  func.func @transform_4(%arg0: i32) -> (i32, i32) {
    %c0_i32 = arith.constant 0 : i32
    %c0_i32_0 = arith.constant 0 : i32
    %c0_i32_1 = arith.constant 0 : i32
    return %c0_i32, %c0_i32_0 : i32, i32
  }
  func.func @transform_5(%arg0: i32) -> (i32, i32) {
    %c0_i32 = arith.constant 0 : i32
    %c0_i32_0 = arith.constant 0 : i32
    return %arg0, %c0_i32 : i32, i32
  }
  func.func @transform_6(%arg0: i32) -> (i32, i32) {
    %c0_i32 = arith.constant 0 : i32
    %c0_i32_0 = arith.constant 0 : i32
    return %arg0, %c0_i32 : i32, i32
  }
}

module attributes {stable_mosaic.version = 11 : i64} {
  func.func @_head_kernel(%arg0: i32, %arg1: memref<16x32xbf16, #tpu.memory_space<vmem>>, %arg2: memref<32x128xbf16, #tpu.memory_space<vmem>>, %arg3: memref<1x128xf32, #tpu.memory_space<vmem>>, %arg4: memref<128x128xbf16, #tpu.memory_space<vmem>>, %arg5: memref<1x128xf32, #tpu.memory_space<vmem>>, %arg6: memref<16x128xf32, #tpu.memory_space<vmem>>, %arg7: memref<16x128xf32, #tpu.memory_space<vmem>>) attributes {dimension_semantics = [#tpu.dimension_semantics<parallel>], iteration_bounds = array<i64: 1>, scalar_prefetch = 0 : i64, scratch_operands = 0 : i64, tpu.core_type = #tpu.core_type<tc>, window_params = [{transform_indices = @transform_0, window_bounds = array<i64: 16, 32>}, {pipeline_mode = #tpu.pipeline_mode<synchronous>, transform_indices = @transform_1, window_bounds = array<i64: 32, 128>}, {pipeline_mode = #tpu.pipeline_mode<synchronous>, transform_indices = @transform_2, window_bounds = array<i64: 1, 128>}, {pipeline_mode = #tpu.pipeline_mode<synchronous>, transform_indices = @transform_3, window_bounds = array<i64: 128, 128>}, {pipeline_mode = #tpu.pipeline_mode<synchronous>, transform_indices = @transform_4, window_bounds = array<i64: 1, 128>}, {transform_indices = @transform_5, window_bounds = array<i64: 16, 128>}, {transform_indices = @transform_6, window_bounds = array<i64: 16, 128>}]} {
    %c0 = arith.constant 0 : index
    %c0_0 = arith.constant 0 : index
    %0 = vector.load %arg1[%c0, %c0_0] : memref<16x32xbf16, #tpu.memory_space<vmem>>, vector<16x32xbf16>
    %c0_1 = arith.constant 0 : index
    %c0_2 = arith.constant 0 : index
    %1 = vector.load %arg2[%c0_1, %c0_2] : memref<32x128xbf16, #tpu.memory_space<vmem>>, vector<32x128xbf16>
    %cst = arith.constant dense<0.000000e+00> : vector<16x128xf32>
    %2 = tpu.matmul %0, %1, %cst {dimension_numbers = #tpu.dot_dimension_numbers<[1], [0], [0], [1], [0, 0, 1, 1], [], []>} : vector<16x32xbf16>, vector<32x128xbf16>, vector<16x128xf32> -> vector<16x128xf32>
    %c0_3 = arith.constant 0 : index
    %c0_4 = arith.constant 0 : index
    %3 = vector.load %arg3[%c0_3, %c0_4] : memref<1x128xf32, #tpu.memory_space<vmem>>, vector<1x128xf32>
    %4 = vector.broadcast %3 : vector<1x128xf32> to vector<16x128xf32>
    %5 = arith.addf %2, %4 : vector<16x128xf32>
    %cst_5 = arith.constant 0.000000e+00 : f32
    %6 = vector.broadcast %cst_5 : f32 to vector<16x128xf32>
    %7 = arith.maximumf %5, %6 : vector<16x128xf32>
    %8 = arith.truncf %7 : vector<16x128xf32> to vector<16x128xbf16>
    %c0_6 = arith.constant 0 : index
    %c0_7 = arith.constant 0 : index
    %9 = vector.load %arg4[%c0_6, %c0_7] : memref<128x128xbf16, #tpu.memory_space<vmem>>, vector<128x128xbf16>
    %cst_8 = arith.constant dense<0.000000e+00> : vector<16x128xf32>
    %10 = tpu.matmul %8, %9, %cst_8 {dimension_numbers = #tpu.dot_dimension_numbers<[1], [0], [0], [1], [0, 0, 1, 1], [], []>} : vector<16x128xbf16>, vector<128x128xbf16>, vector<16x128xf32> -> vector<16x128xf32>
    %c0_9 = arith.constant 0 : index
    %c0_10 = arith.constant 0 : index
    %11 = vector.load %arg5[%c0_9, %c0_10] : memref<1x128xf32, #tpu.memory_space<vmem>>, vector<1x128xf32>
    %12 = vector.broadcast %11 : vector<1x128xf32> to vector<16x128xf32>
    %13 = arith.addf %10, %12 : vector<16x128xf32>
    %c0_11 = arith.constant 0 : index
    %c0_12 = arith.constant 0 : index
    %14 = vector.load %arg6[%c0_11, %c0_12] : memref<16x128xf32, #tpu.memory_space<vmem>>, vector<16x128xf32>
    %15 = arith.addf %13, %14 : vector<16x128xf32>
    %c0_13 = arith.constant 0 : index
    %c0_14 = arith.constant 0 : index
    %16 = vector.load %arg7[%c0_13, %c0_14] : memref<16x128xf32, #tpu.memory_space<vmem>>, vector<16x128xf32>
    tpu.vector_store %arg7[%c0_13, %c0_14], %15 {strides = array<i32>} : memref<16x128xf32, #tpu.memory_space<vmem>>, vector<16x128xf32>,
    return
  }
  func.func @transform_0(%arg0: i32) -> (i32, i32) {
    %c0_i32 = arith.constant 0 : i32
    %c0_i32_0 = arith.constant 0 : i32
    return %arg0, %c0_i32 : i32, i32
  }
  func.func @transform_1(%arg0: i32) -> (i32, i32) {
    %c0_i32 = arith.constant 0 : i32
    %c0_i32_0 = arith.constant 0 : i32
    %c0_i32_1 = arith.constant 0 : i32
    return %c0_i32, %c0_i32_0 : i32, i32
  }
  func.func @transform_2(%arg0: i32) -> (i32, i32) {
    %c0_i32 = arith.constant 0 : i32
    %c0_i32_0 = arith.constant 0 : i32
    %c0_i32_1 = arith.constant 0 : i32
    return %c0_i32, %c0_i32_0 : i32, i32
  }
  func.func @transform_3(%arg0: i32) -> (i32, i32) {
    %c0_i32 = arith.constant 0 : i32
    %c0_i32_0 = arith.constant 0 : i32
    %c0_i32_1 = arith.constant 0 : i32
    return %c0_i32, %c0_i32_0 : i32, i32
  }
  func.func @transform_4(%arg0: i32) -> (i32, i32) {
    %c0_i32 = arith.constant 0 : i32
    %c0_i32_0 = arith.constant 0 : i32
    %c0_i32_1 = arith.constant 0 : i32
    return %c0_i32, %c0_i32_0 : i32, i32
  }
  func.func @transform_5(%arg0: i32) -> (i32, i32) {
    %c0_i32 = arith.constant 0 : i32
    %c0_i32_0 = arith.constant 0 : i32
    return %arg0, %c0_i32 : i32, i32
  }
  func.func @transform_6(%arg0: i32) -> (i32, i32) {
    %c0_i32 = arith.constant 0 : i32
    %c0_i32_0 = arith.constant 0 : i32
    return %arg0, %c0_i32 : i32, i32
  }
}

</mosaic_0001>

<llo_original>
// kernel: tpu_custom_call.1
$region0: #{tpu_custom_call.1}
  #allocation0 [shape = 'u32[]', space=smem, size = 0x4, offset = 0x4, fixed_abs, tag = 'smem constant byte address 0x4 - core index']
  #allocation1 [shape = 'u32[144,128]{1,0:T(1,128)}', space=vmem, size = 0x12000, scoped, tag = 'internal scratch']
  %s0 = inlined_call_operand.hbm [shape: bf16[16,32], index: 0, kind: input, shape index: {}]
  %s1 = inlined_call_operand.hbm [shape: bf16[32,128], index: 1, kind: input, shape index: {}]
  %s2 = inlined_call_operand.vmem [shape: f32[1,128], index: 2, kind: input, shape index: {}]
  %s3 = inlined_call_operand.hbm [shape: bf16[128,128], index: 3, kind: input, shape index: {}]
  %s4 = inlined_call_operand.vmem [shape: f32[1,128], index: 4, kind: input, shape index: {}]
  %s5 = inlined_call_operand.hbm [shape: f32[16,128], index: 5, kind: input, shape index: {}]
  %s6 = inlined_call_operand.hbm [shape: f32[16,128], index: 6, kind: output, shape index: {}]
  %s7 = sld [smem:[#allocation0]]
  $region50: #{tpu_custom_call.1} parent=0
    _
  %s9 = ssub.s32 1, %s7
  %s10 = scalar_select 0, %s9, %s7
  $region1: #{tpu_custom_call.1} parent=0
    #allocation2 [shape = 'u8[4096]{0}', space=vmem, size = 0x1000, scoped, tag = 'input window, operand 0, single buffered']
    #allocation3 [shape = 's32[1]{0}', space=sflag, size = 0x4, scoped, tag = 'scoped memory for tpu_custom_call.1']
    #allocation4 [shape = 's32[1]{0}', space=sflag, size = 0x4, scoped, tag = 'scoped memory for tpu_custom_call.1']
    #allocation5 [shape = 'u8[8192]{0}', space=vmem, size = 0x2000, scoped, tag = 'input window, operand 1, single buffered']
    #allocation6 [shape = 's32[1]{0}', space=sflag, size = 0x4, scoped, tag = 'scoped memory for tpu_custom_call.1']
    #allocation7 [shape = 'u8[32768]{0}', space=vmem, size = 0x8000, scoped, tag = 'input window, operand 3, single buffered']
    #allocation8 [shape = 'u8[8192]{0}', space=vmem, size = 0x2000, scoped, tag = 'input window, operand 5, single buffered']
    #allocation9 [shape = 's32[1]{0}', space=sflag, size = 0x4, scoped, tag = 'scoped memory for tpu_custom_call.1']
    #allocation10 [shape = 'u8[8192]{0}', space=vmem, size = 0x2000, scoped, tag = 'output window, operand 0, single buffered']
    %11 = vsyncpa [#allocation3], 0
    %12 = vsyncpa [#allocation6], 0
    %13 = vsyncpa [#allocation9], 0
    %14 = vsyncpa [#allocation4], 0
    // Predicated region
    $region2: #{tpu_custom_call.1} parent=1 // pred_check
      _
    $region3: #{tpu_custom_call.1} parent=1 // pred_check_branch
      %16 = sbr.rel (0) target = $region5
    $region4: #{tpu_custom_call.1} parent=1 // pred_region
      %s18 = ssub.s32 128, 128
      %19 = vsyncadd [#allocation3], %s18
      %s20 = sshll.u32 [#allocation2], 4
      %s21 = int_to_ptr.vmem [resolvable:$true] %s20
      %26 = dma.hbm_to_vmem [thread:$0]  %s0, 128, %s21, [#allocation3], 64, 64, 4
    $region5: #{tpu_custom_call.1} parent=1 // pred_fallthru
      _
    // Predicated region
    $region6: #{tpu_custom_call.1} parent=1 // pred_check
      _
    $region7: #{tpu_custom_call.1} parent=1 // pred_check_branch
      %28 = sbr.rel (0) target = $region9
    $region8: #{tpu_custom_call.1} parent=1 // pred_region
      %s30 = ssub.s32 256, 256
      %31 = vsyncadd [#allocation6], %s30
      %s32 = sshll.u32 [#allocation5], 4
      %s33 = int_to_ptr.vmem [resolvable:$true] %s32
      %38 = dma.hbm_to_vmem [thread:$0]  %s1, 256, %s33, [#allocation6], 64, 64, 4
    $region9: #{tpu_custom_call.1} parent=1 // pred_fallthru
      _
    // Predicated region
    $region10: #{tpu_custom_call.1} parent=1 // pred_check
      _
    $region11: #{tpu_custom_call.1} parent=1 // pred_check_branch
      %40 = sbr.rel (0) target = $region13
    $region12: #{tpu_custom_call.1} parent=1 // pred_region
      _
    $region13: #{tpu_custom_call.1} parent=1 // pred_fallthru
      _
    // Predicated region
    $region14: #{tpu_custom_call.1} parent=1 // pred_check
      _
    $region15: #{tpu_custom_call.1} parent=1 // pred_check_branch
      %42 = sbr.rel (0) target = $region17
    $region16: #{tpu_custom_call.1} parent=1 // pred_region
      %s44 = ssub.s32 1024, 1024
      %45 = vsyncadd [#allocation6], %s44
      %s46 = sshll.u32 [#allocation7], 4
      %s47 = int_to_ptr.vmem [resolvable:$true] %s46
      %52 = dma.hbm_to_vmem [thread:$0]  %s3, 1024, %s47, [#allocation6], 64, 64, 4
    $region17: #{tpu_custom_call.1} parent=1 // pred_fallthru
      _
    // Predicated region
    $region18: #{tpu_custom_call.1} parent=1 // pred_check
      _
    $region19: #{tpu_custom_call.1} parent=1 // pred_check_branch
      %54 = sbr.rel (0) target = $region21
    $region20: #{tpu_custom_call.1} parent=1 // pred_region
      _
    $region21: #{tpu_custom_call.1} parent=1 // pred_fallthru
      _
    // Predicated region
    $region22: #{tpu_custom_call.1} parent=1 // pred_check
      _
    $region23: #{tpu_custom_call.1} parent=1 // pred_check_branch
      %56 = sbr.rel (0) target = $region25
    $region24: #{tpu_custom_call.1} parent=1 // pred_region
      %s58 = ssub.s32 256, 256
      %59 = vsyncadd [#allocation9], %s58
      %s60 = sshll.u32 [#allocation8], 4
      %s61 = int_to_ptr.vmem [resolvable:$true] %s60
      %66 = dma.hbm_to_vmem [thread:$0]  %s5, 256, %s61, [#allocation9], 128, 128, 8
    $region25: #{tpu_custom_call.1} parent=1 // pred_fallthru
      _
    // Predicated region
    $region26: #{tpu_custom_call.1} parent=1 // pred_check
      _
    $region27: #{tpu_custom_call.1} parent=1 // pred_check_branch
      %68 = sbr.rel (0) target = $region29
    $region28: #{tpu_custom_call.1} parent=1 // pred_region
      %69 = dma.done [#allocation3], 128
    $region29: #{tpu_custom_call.1} parent=1 // pred_fallthru
      _
    // Predicated region
    $region30: #{tpu_custom_call.1} parent=1 // pred_check
      _
    $region31: #{tpu_custom_call.1} parent=1 // pred_check_branch
      %71 = sbr.rel (0) target = $region33
    $region32: #{tpu_custom_call.1} parent=1 // pred_region
      %72 = dma.done [#allocation6], 256
    $region33: #{tpu_custom_call.1} parent=1 // pred_fallthru
      _
    // Predicated region
    $region34: #{tpu_custom_call.1} parent=1 // pred_check
      _
    $region35: #{tpu_custom_call.1} parent=1 // pred_check_branch
      %74 = sbr.rel (0) target = $region37
    $region36: #{tpu_custom_call.1} parent=1 // pred_region
      %75 = dma.done [#allocation6], 1024
    $region37: #{tpu_custom_call.1} parent=1 // pred_fallthru
      _
    // Predicated region
    $region38: #{tpu_custom_call.1} parent=1 // pred_check
      _
    $region39: #{tpu_custom_call.1} parent=1 // pred_check_branch
      %77 = sbr.rel (0) target = $region41
    $region40: #{tpu_custom_call.1} parent=1 // pred_region
      %78 = dma.done [#allocation9], 256
    $region41: #{tpu_custom_call.1} parent=1 // pred_fallthru
      _
    %v80 = vld [vmem:[#allocation2] sm:$0xf]
    %v81 = vld [vmem:[#allocation2 + $0x4] sm:$0xf]
    %v82 = vld [vmem:[#allocation5] sm:$0xf]
    %v83 = vld [vmem:[#allocation5 + $0x4] sm:$0xf]
    %v84 = vld [vmem:[#allocation5 + $0x8] sm:$0xf]
    %v85 = vld [vmem:[#allocation5 + $0xc] sm:$0xf]
    %v86 = vld [vmem:[%s2] sm:$0x1]
    %v88 = vlaneseq
    %v89 = vshrl.u32 %v88, 7
    %v90 = vsub.s32 0, %v89
    %v91 = vrot.slane %v86, %v90
    %v95 = vunpack.c.l.b16 %v80
    %v96 = vunpack.c.l.b16 %v81
    %v97 = vpack.c.b16 %v96, %v95
    %v102 = vunpack.c.l.b16 %v82
    %v103 = vunpack.c.l.b16 %v83
    %v104 = vunpack.c.l.b16 %v84
    %v105 = vunpack.c.l.b16 %v85
    %v106 = vpack.c.b16 %v103, %v102
    %v107 = vpack.c.b16 %v105, %v104
    %vm110 = vcmask 261120
    %v112 = vsel %vm110, %v97, 0
    %114 = vmatprep.subr.bf16.mxu0 0
    %115 = vmatpush1.bf16.msra.mxu0 0
    %116 = vmatprep.subr.bf16.mxu0 0
    %117 = vmatpush1.bf16.msra.mxu0 0
    %118 = vmatprep.subr.bf16.mxu0 0
    %119 = vmatpush1.bf16.msra.mxu0 0
    %120 = vmatprep.subr.bf16.mxu0 0
    %121 = vmatpush1.bf16.msra.mxu0 0
    %122 = vmatprep.subr.bf16.mxu0 0
    %123 = vmatpush1.bf16.msra.mxu0 0
    %124 = vmatprep.subr.bf16.mxu0 0
    %125 = vmatpush1.bf16.msra.mxu0 0
    %126 = vmatprep.subr.bf16.mxu0 0
    %127 = vmatpush1.bf16.msra.mxu0 %v107
    %128 = vmatprep.subr.bf16.mxu0 0
    %129 = vmatpush1.bf16.msra.mxu0 %v106
    %130 = vmatprep.subr.bf16.mxu0 0
    %131 = vmatpush2.bf16.msra.mxu0 0
    %132 = vmatprep.subr.bf16.mxu0 0
    %133 = vmatpush2.bf16.msra.mxu0 0
    %134 = vmatprep.subr.bf16.mxu0 0
    %135 = vmatpush2.bf16.msra.mxu0 0
    %136 = vmatprep.subr.bf16.mxu0 0
    %137 = vmatpush2.bf16.msra.mxu0 0
    %138 = vmatprep.subr.bf16.mxu0 0
    %139 = vmatpush2.bf16.msra.mxu0 0
    %140 = vmatprep.subr.bf16.mxu0 0
    %141 = vmatpush2.bf16.msra.mxu0 0
    %142 = vmatprep.subr.bf16.mxu0 0
    %143 = vmatpush2.bf16.msra.mxu0 0
    %144 = vmatprep.subr.bf16.mxu0 0
    %145 = vmatpush2.bf16.msra.mxu0 0
    %146 = vmatprep.mubr.bf16.mxu0 0
    %147 = vmatmul.mubr.bf16.gmra.mxu0 %v112
    %v148 = vpop.f32.mrf.mxu0
    %v149 = vadd.f32 %v91, %v148
    %v150 = vpop.f32.mrf.mxu0
    %v151 = vpop.f32.mrf.mxu0
    %v152 = vadd.f32 %v91, %v151
    %v153 = vpop.f32.mrf.mxu0
    %154 = vdwg.mxu0
    %v155 = vmax.f32 %v149, 0.0
    %v156 = vmax.f32 %v152, 0.0
    %v157 = vpack.c.bf16 %v156, %v155
    %v158 = vld [vmem:[#allocation7] sm:$0xf]
    %v159 = vld [vmem:[#allocation7 + $0x4] sm:$0xf]
    %v160 = vld [vmem:[#allocation7 + $0x8] sm:$0xf]
    %v161 = vld [vmem:[#allocation7 + $0xc] sm:$0xf]
    %v162 = vld [vmem:[#allocation7 + $0x10] sm:$0xf]
    %v163 = vld [vmem:[#allocation7 + $0x14] sm:$0xf]
    %v164 = vld [vmem:[#allocation7 + $0x18] sm:$0xf]
    %v165 = vld [vmem:[#allocation7 + $0x1c] sm:$0xf]
    %v166 = vld [vmem:[#allocation7 + $0x20] sm:$0xf]
    %v167 = vld [vmem:[#allocation7 + $0x24] sm:$0xf]
    %v168 = vld [vmem:[#allocation7 + $0x28] sm:$0xf]
    %v169 = vld [vmem:[#allocation7 + $0x2c] sm:$0xf]
    %v170 = vld [vmem:[#allocation7 + $0x30] sm:$0xf]
    %v171 = vld [vmem:[#allocation7 + $0x34] sm:$0xf]
    %v172 = vld [vmem:[#allocation7 + $0x38] sm:$0xf]
    %v173 = vld [vmem:[#allocation7 + $0x3c] sm:$0xf]
    %v174 = vld [vmem:[%s4] sm:$0x1]
    %v176 = vlaneseq
    %v177 = vshrl.u32 %v176, 7
    %v178 = vsub.s32 0, %v177
    %v179 = vrot.slane %v174, %v178
    %v197 = vunpack.c.l.b16 %v158
    %v198 = vunpack.c.l.b16 %v159
    %v199 = vunpack.c.l.b16 %v160
    %v200 = vunpack.c.l.b16 %v161
    %v201 = vunpack.c.l.b16 %v162
    %v202 = vunpack.c.l.b16 %v163
    %v203 = vunpack.c.l.b16 %v164
    %v204 = vunpack.c.l.b16 %v165
    %v205 = vunpack.c.l.b16 %v166
    %v206 = vunpack.c.l.b16 %v167
    %v207 = vunpack.c.l.b16 %v168
    %v208 = vunpack.c.l.b16 %v169
    %v209 = vunpack.c.l.b16 %v170
    %v210 = vunpack.c.l.b16 %v171
    %v211 = vunpack.c.l.b16 %v172
    %v212 = vunpack.c.l.b16 %v173
    %v213 = vpack.c.b16 %v198, %v197
    %v214 = vpack.c.b16 %v200, %v199
    %v215 = vpack.c.b16 %v202, %v201
    %v216 = vpack.c.b16 %v204, %v203
    %v217 = vpack.c.b16 %v206, %v205
    %v218 = vpack.c.b16 %v208, %v207
    %v219 = vpack.c.b16 %v210, %v209
    %v220 = vpack.c.b16 %v212, %v211
    %229 = vmatprep.subr.bf16.mxu0 0
    %230 = vmatpush1.bf16.msra.mxu0 %v220
    %231 = vmatprep.subr.bf16.mxu0 0
    %232 = vmatpush1.bf16.msra.mxu0 %v219
    %233 = vmatprep.subr.bf16.mxu0 0
    %234 = vmatpush1.bf16.msra.mxu0 %v218
    %235 = vmatprep.subr.bf16.mxu0 0
    %236 = vmatpush1.bf16.msra.mxu0 %v217
    %237 = vmatprep.subr.bf16.mxu0 0
    %238 = vmatpush1.bf16.msra.mxu0 %v216
    %239 = vmatprep.subr.bf16.mxu0 0
    %240 = vmatpush1.bf16.msra.mxu0 %v215
    %241 = vmatprep.subr.bf16.mxu0 0
    %242 = vmatpush1.bf16.msra.mxu0 %v214
    %243 = vmatprep.subr.bf16.mxu0 0
    %244 = vmatpush1.bf16.msra.mxu0 %v213
    %245 = vmatprep.subr.bf16.mxu0 0
    %246 = vmatpush2.bf16.msra.mxu0 0
    %247 = vmatprep.subr.bf16.mxu0 0
    %248 = vmatpush2.bf16.msra.mxu0 0
    %249 = vmatprep.subr.bf16.mxu0 0
    %250 = vmatpush2.bf16.msra.mxu0 0
    %251 = vmatprep.subr.bf16.mxu0 0
    %252 = vmatpush2.bf16.msra.mxu0 0
    %253 = vmatprep.subr.bf16.mxu0 0
    %254 = vmatpush2.bf16.msra.mxu0 0
    %255 = vmatprep.subr.bf16.mxu0 0
    %256 = vmatpush2.bf16.msra.mxu0 0
    %257 = vmatprep.subr.bf16.mxu0 0
    %258 = vmatpush2.bf16.msra.mxu0 0
    %259 = vmatprep.subr.bf16.mxu0 0
    %260 = vmatpush2.bf16.msra.mxu0 0
    %261 = vmatprep.mubr.bf16.mxu0 0
    %262 = vmatmul.mubr.bf16.gmra.mxu0 %v157
    %v263 = vpop.f32.mrf.mxu0
    %v264 = vadd.f32 %v179, %v263
    %v265 = vpop.f32.mrf.mxu0
    %v266 = vpop.f32.mrf.mxu0
    %v267 = vadd.f32 %v179, %v266
    %v268 = vpop.f32.mrf.mxu0
    %269 = vdwg.mxu0
    %v270 = vld [vmem:[#allocation8] sm:$0xff]
    %v271 = vld [vmem:[#allocation8 + $0x8] sm:$0xff]
    %v272 = vadd.f32 %v264, %v270
    %v273 = vadd.f32 %v267, %v271
    %274 = vst [vmem:[#allocation10] sm:$0xff] %v272
    %275 = vst [vmem:[#allocation10 + $0x8] sm:$0xff] %v273
    // Predicated region
    $region42: #{tpu_custom_call.1} parent=1 // pred_check
      _
    $region43: #{tpu_custom_call.1} parent=1 // pred_check_branch
      %277 = sbr.rel (0) target = $region45
    $region44: #{tpu_custom_call.1} parent=1 // pred_region
      %s279 = ssub.s32 256, 256
      %280 = vsyncadd [#allocation4], %s279
      %s281 = sshll.u32 [#allocation10], 4
      %s282 = int_to_ptr.vmem [resolvable:$true] %s281
      %287 = dma.vmem_to_hbm [thread:$0]  %s282, 256, %s6, [#allocation4], 128, 128, 8
    $region45: #{tpu_custom_call.1} parent=1 // pred_fallthru
      _
    // Predicated region
    $region46: #{tpu_custom_call.1} parent=1 // pred_check
      _
    $region47: #{tpu_custom_call.1} parent=1 // pred_check_branch
      %289 = sbr.rel (0) target = $region49
    $region48: #{tpu_custom_call.1} parent=1 // pred_region
      %290 = dma.done [#allocation4], 256
    $region49: #{tpu_custom_call.1} parent=1 // pred_fallthru
      _
    %291 = vsyncpa [#allocation3], 1
    %292 = vsyncpa [#allocation6], 1
    %293 = vsyncpa [#allocation9], 1
    %294 = vsyncpa [#allocation4], 1

// kernel: tpu_custom_call.1
$region0: #{tpu_custom_call.1}
  #allocation0 [shape = 'u32[]', space=smem, size = 0x4, offset = 0x4, fixed_abs, tag = 'smem constant byte address 0x4 - core index']
  #allocation1 [shape = 'u32[144,128]{1,0:T(1,128)}', space=vmem, size = 0x12000, scoped, tag = 'internal scratch']
  %s0 = inlined_call_operand.hbm [shape: bf16[16,32], index: 0, kind: input, shape index: {}]
  %s1 = inlined_call_operand.hbm [shape: bf16[32,128], index: 1, kind: input, shape index: {}]
  %s2 = inlined_call_operand.vmem [shape: f32[1,128], index: 2, kind: input, shape index: {}]
  %s3 = inlined_call_operand.hbm [shape: bf16[128,128], index: 3, kind: input, shape index: {}]
  %s4 = inlined_call_operand.vmem [shape: f32[1,128], index: 4, kind: input, shape index: {}]
  %s5 = inlined_call_operand.hbm [shape: f32[16,128], index: 5, kind: input, shape index: {}]
  %s6 = inlined_call_operand.hbm [shape: f32[16,128], index: 6, kind: output, shape index: {}]
  %s7 = sld [smem:[#allocation0]]
  $region50: #{tpu_custom_call.1} parent=0
    _
  %s9 = ssub.s32 1, %s7
  %s10 = scalar_select 0, %s9, %s7
  $region1: #{tpu_custom_call.1} parent=0
    #allocation2 [shape = 'u8[4096]{0}', space=vmem, size = 0x1000, scoped, tag = 'input window, operand 0, single buffered']
    #allocation3 [shape = 's32[1]{0}', space=sflag, size = 0x4, scoped, tag = 'scoped memory for tpu_custom_call.1']
    #allocation4 [shape = 's32[1]{0}', space=sflag, size = 0x4, scoped, tag = 'scoped memory for tpu_custom_call.1']
    #allocation5 [shape = 'u8[8192]{0}', space=vmem, size = 0x2000, scoped, tag = 'input window, operand 1, single buffered']
    #allocation6 [shape = 's32[1]{0}', space=sflag, size = 0x4, scoped, tag = 'scoped memory for tpu_custom_call.1']
    #allocation7 [shape = 'u8[32768]{0}', space=vmem, size = 0x8000, scoped, tag = 'input window, operand 3, single buffered']
    #allocation8 [shape = 'u8[8192]{0}', space=vmem, size = 0x2000, scoped, tag = 'input window, operand 5, single buffered']
    #allocation9 [shape = 's32[1]{0}', space=sflag, size = 0x4, scoped, tag = 'scoped memory for tpu_custom_call.1']
    #allocation10 [shape = 'u8[8192]{0}', space=vmem, size = 0x2000, scoped, tag = 'output window, operand 0, single buffered']
    %11 = vsyncpa [#allocation3], 0
    %12 = vsyncpa [#allocation6], 0
    %13 = vsyncpa [#allocation9], 0
    %14 = vsyncpa [#allocation4], 0
    // Predicated region
    $region2: #{tpu_custom_call.1} parent=1 // pred_check
      _
    $region3: #{tpu_custom_call.1} parent=1 // pred_check_branch
      %16 = sbr.rel (0) target = $region5
    $region4: #{tpu_custom_call.1} parent=1 // pred_region
      %s18 = ssub.s32 128, 128
      %19 = vsyncadd [#allocation3], %s18
      %s20 = sshll.u32 [#allocation2], 4
      %s21 = int_to_ptr.vmem [resolvable:$true] %s20
      %26 = dma.hbm_to_vmem [thread:$0]  %s0, 128, %s21, [#allocation3], 64, 64, 4
    $region5: #{tpu_custom_call.1} parent=1 // pred_fallthru
      _
    // Predicated region
    $region6: #{tpu_custom_call.1} parent=1 // pred_check
      _
    $region7: #{tpu_custom_call.1} parent=1 // pred_check_branch
      %28 = sbr.rel (0) target = $region9
    $region8: #{tpu_custom_call.1} parent=1 // pred_region
      %s30 = ssub.s32 256, 256
      %31 = vsyncadd [#allocation6], %s30
      %s32 = sshll.u32 [#allocation5], 4
      %s33 = int_to_ptr.vmem [resolvable:$true] %s32
      %38 = dma.hbm_to_vmem [thread:$0]  %s1, 256, %s33, [#allocation6], 64, 64, 4
    $region9: #{tpu_custom_call.1} parent=1 // pred_fallthru
      _
    // Predicated region
    $region10: #{tpu_custom_call.1} parent=1 // pred_check
      _
    $region11: #{tpu_custom_call.1} parent=1 // pred_check_branch
      %40 = sbr.rel (0) target = $region13
    $region12: #{tpu_custom_call.1} parent=1 // pred_region
      _
    $region13: #{tpu_custom_call.1} parent=1 // pred_fallthru
      _
    // Predicated region
    $region14: #{tpu_custom_call.1} parent=1 // pred_check
      _
    $region15: #{tpu_custom_call.1} parent=1 // pred_check_branch
      %42 = sbr.rel (0) target = $region17
    $region16: #{tpu_custom_call.1} parent=1 // pred_region
      %s44 = ssub.s32 1024, 1024
      %45 = vsyncadd [#allocation6], %s44
      %s46 = sshll.u32 [#allocation7], 4
      %s47 = int_to_ptr.vmem [resolvable:$true] %s46
      %52 = dma.hbm_to_vmem [thread:$0]  %s3, 1024, %s47, [#allocation6], 64, 64, 4
    $region17: #{tpu_custom_call.1} parent=1 // pred_fallthru
      _
    // Predicated region
    $region18: #{tpu_custom_call.1} parent=1 // pred_check
      _
    $region19: #{tpu_custom_call.1} parent=1 // pred_check_branch
      %54 = sbr.rel (0) target = $region21
    $region20: #{tpu_custom_call.1} parent=1 // pred_region
      _
    $region21: #{tpu_custom_call.1} parent=1 // pred_fallthru
      _
    // Predicated region
    $region22: #{tpu_custom_call.1} parent=1 // pred_check
      _
    $region23: #{tpu_custom_call.1} parent=1 // pred_check_branch
      %56 = sbr.rel (0) target = $region25
    $region24: #{tpu_custom_call.1} parent=1 // pred_region
      %s58 = ssub.s32 256, 256
      %59 = vsyncadd [#allocation9], %s58
      %s60 = sshll.u32 [#allocation8], 4
      %s61 = int_to_ptr.vmem [resolvable:$true] %s60
      %66 = dma.hbm_to_vmem [thread:$0]  %s5, 256, %s61, [#allocation9], 128, 128, 8
    $region25: #{tpu_custom_call.1} parent=1 // pred_fallthru
      _
    // Predicated region
    $region26: #{tpu_custom_call.1} parent=1 // pred_check
      _
    $region27: #{tpu_custom_call.1} parent=1 // pred_check_branch
      %68 = sbr.rel (0) target = $region29
    $region28: #{tpu_custom_call.1} parent=1 // pred_region
      %69 = dma.done [#allocation3], 128
    $region29: #{tpu_custom_call.1} parent=1 // pred_fallthru
      _
    // Predicated region
    $region30: #{tpu_custom_call.1} parent=1 // pred_check
      _
    $region31: #{tpu_custom_call.1} parent=1 // pred_check_branch
      %71 = sbr.rel (0) target = $region33
    $region32: #{tpu_custom_call.1} parent=1 // pred_region
      %72 = dma.done [#allocation6], 256
    $region33: #{tpu_custom_call.1} parent=1 // pred_fallthru
      _
    // Predicated region
    $region34: #{tpu_custom_call.1} parent=1 // pred_check
      _
    $region35: #{tpu_custom_call.1} parent=1 // pred_check_branch
      %74 = sbr.rel (0) target = $region37
    $region36: #{tpu_custom_call.1} parent=1 // pred_region
      %75 = dma.done [#allocation6], 1024
    $region37: #{tpu_custom_call.1} parent=1 // pred_fallthru
      _
    // Predicated region
    $region38: #{tpu_custom_call.1} parent=1 // pred_check
      _
    $region39: #{tpu_custom_call.1} parent=1 // pred_check_branch
      %77 = sbr.rel (0) target = $region41
    $region40: #{tpu_custom_call.1} parent=1 // pred_region
      %78 = dma.done [#allocation9], 256
    $region41: #{tpu_custom_call.1} parent=1 // pred_fallthru
      _
    %v80 = vld [vmem:[#allocation2] sm:$0xf]
    %v81 = vld [vmem:[#allocation2 + $0x4] sm:$0xf]
    %v82 = vld [vmem:[#allocation5] sm:$0xf]
    %v83 = vld [vmem:[#allocation5 + $0x4] sm:$0xf]
    %v84 = vld [vmem:[#allocation5 + $0x8] sm:$0xf]
    %v85 = vld [vmem:[#allocation5 + $0xc] sm:$0xf]
    %v86 = vld [vmem:[%s2] sm:$0x1]
    %v88 = vlaneseq
    %v89 = vshrl.u32 %v88, 7
    %v90 = vsub.s32 0, %v89
    %v91 = vrot.slane %v86, %v90
    %v95 = vunpack.c.l.b16 %v80
    %v96 = vunpack.c.l.b16 %v81
    %v97 = vpack.c.b16 %v96, %v95
    %v102 = vunpack.c.l.b16 %v82
    %v103 = vunpack.c.l.b16 %v83
    %v104 = vunpack.c.l.b16 %v84
    %v105 = vunpack.c.l.b16 %v85
    %v106 = vpack.c.b16 %v103, %v102
    %v107 = vpack.c.b16 %v105, %v104
    %vm110 = vcmask 261120
    %v112 = vsel %vm110, %v97, 0
    %114 = vmatprep.subr.bf16.mxu0 0
    %115 = vmatpush1.bf16.msra.mxu0 0
    %116 = vmatprep.subr.bf16.mxu0 0
    %117 = vmatpush1.bf16.msra.mxu0 0
    %118 = vmatprep.subr.bf16.mxu0 0
    %119 = vmatpush1.bf16.msra.mxu0 0
    %120 = vmatprep.subr.bf16.mxu0 0
    %121 = vmatpush1.bf16.msra.mxu0 0
    %122 = vmatprep.subr.bf16.mxu0 0
    %123 = vmatpush1.bf16.msra.mxu0 0
    %124 = vmatprep.subr.bf16.mxu0 0
    %125 = vmatpush1.bf16.msra.mxu0 0
    %126 = vmatprep.subr.bf16.mxu0 0
    %127 = vmatpush1.bf16.msra.mxu0 %v107
    %128 = vmatprep.subr.bf16.mxu0 0
    %129 = vmatpush1.bf16.msra.mxu0 %v106
    %130 = vmatprep.subr.bf16.mxu0 0
    %131 = vmatpush2.bf16.msra.mxu0 0
    %132 = vmatprep.subr.bf16.mxu0 0
    %133 = vmatpush2.bf16.msra.mxu0 0
    %134 = vmatprep.subr.bf16.mxu0 0
    %135 = vmatpush2.bf16.msra.mxu0 0
    %136 = vmatprep.subr.bf16.mxu0 0
    %137 = vmatpush2.bf16.msra.mxu0 0
    %138 = vmatprep.subr.bf16.mxu0 0
    %139 = vmatpush2.bf16.msra.mxu0 0
    %140 = vmatprep.subr.bf16.mxu0 0
    %141 = vmatpush2.bf16.msra.mxu0 0
    %142 = vmatprep.subr.bf16.mxu0 0
    %143 = vmatpush2.bf16.msra.mxu0 0
    %144 = vmatprep.subr.bf16.mxu0 0
    %145 = vmatpush2.bf16.msra.mxu0 0
    %146 = vmatprep.mubr.bf16.mxu0 0
    %147 = vmatmul.mubr.bf16.gmra.mxu0 %v112
    %v148 = vpop.f32.mrf.mxu0
    %v149 = vadd.f32 %v91, %v148
    %v150 = vpop.f32.mrf.mxu0
    %v151 = vpop.f32.mrf.mxu0
    %v152 = vadd.f32 %v91, %v151
    %v153 = vpop.f32.mrf.mxu0
    %154 = vdwg.mxu0
    %v155 = vmax.f32 %v149, 0.0
    %v156 = vmax.f32 %v152, 0.0
    %v157 = vpack.c.bf16 %v156, %v155
    %v158 = vld [vmem:[#allocation7] sm:$0xf]
    %v159 = vld [vmem:[#allocation7 + $0x4] sm:$0xf]
    %v160 = vld [vmem:[#allocation7 + $0x8] sm:$0xf]
    %v161 = vld [vmem:[#allocation7 + $0xc] sm:$0xf]
    %v162 = vld [vmem:[#allocation7 + $0x10] sm:$0xf]
    %v163 = vld [vmem:[#allocation7 + $0x14] sm:$0xf]
    %v164 = vld [vmem:[#allocation7 + $0x18] sm:$0xf]
    %v165 = vld [vmem:[#allocation7 + $0x1c] sm:$0xf]
    %v166 = vld [vmem:[#allocation7 + $0x20] sm:$0xf]
    %v167 = vld [vmem:[#allocation7 + $0x24] sm:$0xf]
    %v168 = vld [vmem:[#allocation7 + $0x28] sm:$0xf]
    %v169 = vld [vmem:[#allocation7 + $0x2c] sm:$0xf]
    %v170 = vld [vmem:[#allocation7 + $0x30] sm:$0xf]
    %v171 = vld [vmem:[#allocation7 + $0x34] sm:$0xf]
    %v172 = vld [vmem:[#allocation7 + $0x38] sm:$0xf]
    %v173 = vld [vmem:[#allocation7 + $0x3c] sm:$0xf]
    %v174 = vld [vmem:[%s4] sm:$0x1]
    %v176 = vlaneseq
    %v177 = vshrl.u32 %v176, 7
    %v178 = vsub.s32 0, %v177
    %v179 = vrot.slane %v174, %v178
    %v197 = vunpack.c.l.b16 %v158
    %v198 = vunpack.c.l.b16 %v159
    %v199 = vunpack.c.l.b16 %v160
    %v200 = vunpack.c.l.b16 %v161
    %v201 = vunpack.c.l.b16 %v162
    %v202 = vunpack.c.l.b16 %v163
    %v203 = vunpack.c.l.b16 %v164
    %v204 = vunpack.c.l.b16 %v165
    %v205 = vunpack.c.l.b16 %v166
    %v206 = vunpack.c.l.b16 %v167
    %v207 = vunpack.c.l.b16 %v168
    %v208 = vunpack.c.l.b16 %v169
    %v209 = vunpack.c.l.b16 %v170
    %v210 = vunpack.c.l.b16 %v171
    %v211 = vunpack.c.l.b16 %v172
    %v212 = vunpack.c.l.b16 %v173
    %v213 = vpack.c.b16 %v198, %v197
    %v214 = vpack.c.b16 %v200, %v199
    %v215 = vpack.c.b16 %v202, %v201
    %v216 = vpack.c.b16 %v204, %v203
    %v217 = vpack.c.b16 %v206, %v205
    %v218 = vpack.c.b16 %v208, %v207
    %v219 = vpack.c.b16 %v210, %v209
    %v220 = vpack.c.b16 %v212, %v211
    %229 = vmatprep.subr.bf16.mxu0 0
    %230 = vmatpush1.bf16.msra.mxu0 %v220
    %231 = vmatprep.subr.bf16.mxu0 0
    %232 = vmatpush1.bf16.msra.mxu0 %v219
    %233 = vmatprep.subr.bf16.mxu0 0
    %234 = vmatpush1.bf16.msra.mxu0 %v218
    %235 = vmatprep.subr.bf16.mxu0 0
    %236 = vmatpush1.bf16.msra.mxu0 %v217
    %237 = vmatprep.subr.bf16.mxu0 0
    %238 = vmatpush1.bf16.msra.mxu0 %v216
    %239 = vmatprep.subr.bf16.mxu0 0
    %240 = vmatpush1.bf16.msra.mxu0 %v215
    %241 = vmatprep.subr.bf16.mxu0 0
    %242 = vmatpush1.bf16.msra.mxu0 %v214
    %243 = vmatprep.subr.bf16.mxu0 0
    %244 = vmatpush1.bf16.msra.mxu0 %v213
    %245 = vmatprep.subr.bf16.mxu0 0
    %246 = vmatpush2.bf16.msra.mxu0 0
    %247 = vmatprep.subr.bf16.mxu0 0
    %248 = vmatpush2.bf16.msra.mxu0 0
    %249 = vmatprep.subr.bf16.mxu0 0
    %250 = vmatpush2.bf16.msra.mxu0 0
    %251 = vmatprep.subr.bf16.mxu0 0
    %252 = vmatpush2.bf16.msra.mxu0 0
    %253 = vmatprep.subr.bf16.mxu0 0
    %254 = vmatpush2.bf16.msra.mxu0 0
    %255 = vmatprep.subr.bf16.mxu0 0
    %256 = vmatpush2.bf16.msra.mxu0 0
    %257 = vmatprep.subr.bf16.mxu0 0
    %258 = vmatpush2.bf16.msra.mxu0 0
    %259 = vmatprep.subr.bf16.mxu0 0
    %260 = vmatpush2.bf16.msra.mxu0 0
    %261 = vmatprep.mubr.bf16.mxu0 0
    %262 = vmatmul.mubr.bf16.gmra.mxu0 %v157
    %v263 = vpop.f32.mrf.mxu0
    %v264 = vadd.f32 %v179, %v263
    %v265 = vpop.f32.mrf.mxu0
    %v266 = vpop.f32.mrf.mxu0
    %v267 = vadd.f32 %v179, %v266
    %v268 = vpop.f32.mrf.mxu0
    %269 = vdwg.mxu0
    %v270 = vld [vmem:[#allocation8] sm:$0xff]
    %v271 = vld [vmem:[#allocation8 + $0x8] sm:$0xff]
    %v272 = vadd.f32 %v264, %v270
    %v273 = vadd.f32 %v267, %v271
    %274 = vst [vmem:[#allocation10] sm:$0xff] %v272
    %275 = vst [vmem:[#allocation10 + $0x8] sm:$0xff] %v273
    // Predicated region
    $region42: #{tpu_custom_call.1} parent=1 // pred_check
      _
    $region43: #{tpu_custom_call.1} parent=1 // pred_check_branch
      %277 = sbr.rel (0) target = $region45
    $region44: #{tpu_custom_call.1} parent=1 // pred_region
      %s279 = ssub.s32 256, 256
      %280 = vsyncadd [#allocation4], %s279
      %s281 = sshll.u32 [#allocation10], 4
      %s282 = int_to_ptr.vmem [resolvable:$true] %s281
      %287 = dma.vmem_to_hbm [thread:$0]  %s282, 256, %s6, [#allocation4], 128, 128, 8
    $region45: #{tpu_custom_call.1} parent=1 // pred_fallthru
      _
    // Predicated region
    $region46: #{tpu_custom_call.1} parent=1 // pred_check
      _
    $region47: #{tpu_custom_call.1} parent=1 // pred_check_branch
      %289 = sbr.rel (0) target = $region49
    $region48: #{tpu_custom_call.1} parent=1 // pred_region
      %290 = dma.done [#allocation4], 256
    $region49: #{tpu_custom_call.1} parent=1 // pred_fallthru
      _
    %291 = vsyncpa [#allocation3], 1
    %292 = vsyncpa [#allocation6], 1
    %293 = vsyncpa [#allocation9], 1
    %294 = vsyncpa [#allocation4], 1

</llo_original>
